<compile_context>
chip_gen: v5e
topology: v5e:2x2
jax: 0.10.0
libtpu: 0.0.40
codegen_flags: <defaults>
</compile_context>

<pallas_src>
import functools
import math

import jax
import jax.numpy as jnp
from jax import lax
from jax.experimental import pallas as pl
from jax.experimental.pallas import tpu as pltpu


def _round_up(x, m):
    return ((x + m - 1) // m) * m


def _cdiv(a, b):
    return (a + b - 1) // b


def _polyphase_kernel(x_ref, w_ref, b_ref, o_ref, *scratch, Kp, TQ, HA, fold):
    """One (batch, n-tile, time-tile) grid step of the polyphase transposed conv.

    x_ref:  (1, TQ, Cin)                current input time block (compute dtype)
    w_ref:  (Kp*Cin, TN) if fold else (Kp, Cin, TN)   tap-flipped, phase-major weights
    b_ref:  (1, TN)                     f32 bias (phase-major, lane padded)
    o_ref:  (1, TQ, TN)                 output tile
    scratch[0] (only if Kp > 1): (HA + TQ, Cin) persistent windowed-input buffer;
        rows [0, HA) hold the halo (last rows of the previous time block).
    """
    i = pl.program_id(2)           # time-tile index (sequential / "arbitrary")
    Cin = x_ref.shape[-1]
    H = Kp - 1                     # halo rows actually needed
    base = HA - H                  # first halo row that is ever read

    if Kp > 1:
        xw_ref = scratch[0]

        @pl.when(i == 0)
        def _init_halo():
            # Implicit Kp-1 left zero-padding of the polyphase input.
            xw_ref[0:HA, :] = jnp.zeros((HA, Cin), x_ref.dtype)

        @pl.when(i > 0)
        def _carry_halo():
            # Last HA rows written during the previous time step become the halo.
            xw_ref[0:HA, :] = xw_ref[TQ:TQ + HA, :]

        xw_ref[HA:HA + TQ, :] = x_ref[0]

    if fold:
        if Kp > 1:
            # Fold all taps into one matmul: contraction dim Kp*Cin.
            xin = jnp.concatenate(
                [xw_ref[base + j:base + j + TQ, :] for j in range(Kp)], axis=1)
        else:
            xin = x_ref[0]
        acc = jnp.dot(xin, w_ref[...], preferred_element_type=jnp.float32)
    else:
        # Per-tap matmuls accumulated in registers (no VMEM RMW accumulator).
        acc = jnp.dot(xw_ref[base:base + TQ, :], w_ref[0],
                      preferred_element_type=jnp.float32)
        for j in range(1, Kp):
            acc = acc + jnp.dot(xw_ref[base + j:base + j + TQ, :], w_ref[j],
                                preferred_element_type=jnp.float32)

    o_ref[0] = (acc + b_ref[...]).astype(o_ref.dtype)


def _vmem_policy(vmem_budget_bytes):
    """Budget used by the tile chooser + matching compiler vmem limit."""
    if vmem_budget_bytes is not None:
        budget = int(vmem_budget_bytes)
        return budget, budget + (16 << 20)
    try:
        cap = int(pltpu.get_tpu_info().vmem_capacity_bytes)
    except Exception:
        cap = 64 << 20            # v7x has the smallest per-core VMEM
    budget = min(28 << 20, cap // 4)
    limit = min(cap // 2, budget + (16 << 20))
    return budget, limit


def _choose_n_tile(sCout, KpCin, cbytes, budget):
    """Output-column tile (multiple of 128) so resident weights stay bounded."""
    sCoutP = _round_up(sCout, 128)
    weight_budget = max(budget // 3, 2 * KpCin * 128 * cbytes)
    tn = (weight_budget // (2 * KpCin * cbytes)) // 128 * 128
    tn = int(max(128, min(tn, sCoutP)))
    n_sc = _cdiv(sCoutP, tn)
    return tn, n_sc, n_sc * tn


def _choose_time_tile(Q, per_tq, fixed, budget, sub, ha, tq_cap):
    """Time tile: largest (preferring multiples of 256) that fits the budget."""
    tq_min = max(sub, ha)
    avail = max(budget - fixed, tq_min * per_tq)
    tq = int(avail // per_tq)
    tq = min(tq, tq_cap)
    if tq >= 256:
        tq = (tq // 256) * 256
    else:
        tq = max(tq_min, (tq // sub) * sub)
    tq = max(tq, tq_min)
    tq = min(tq, max(tq_min, _round_up(Q, sub)))   # don't exceed the problem
    return tq


def sconv_transpose1d(x, weight, bias, *, stride=1, causal=False,
                      trim_right_ratio=1.0, compute_dtype=jnp.bfloat16,
                      vmem_budget_bytes=None, tq_cap=1024):
    """Forward pass of SConvTranspose1d with norm='none'.

    x:      (B, Cin, L)      PyTorch NCL layout
    weight: (Cin, Cout, K)   PyTorch ConvTranspose1d weight layout
    bias:   (Cout,)
    returns (B, Cout, L * stride), dtype of x.
    """
    B, Cin, L = x.shape
    Cin_w, Cout, K = weight.shape
    assert Cin_w == Cin
    s = int(stride)
    assert s >= 1
    assert K >= s, "kernel_size must be >= stride (padding_total >= 0)"
    assert causal or trim_right_ratio == 1.0
    assert 0.0 <= trim_right_ratio <= 1.0

    Kp = _cdiv(K, s)                 # taps per output phase
    sCout = s * Cout
    KpCin = Kp * Cin
    out_dtype = x.dtype
    cbytes = jnp.dtype(compute_dtype).itemsize
    obytes = jnp.dtype(out_dtype).itemsize
    sub = 8 * max(1, 4 // cbytes)    # native sublane multiple for compute dtype

    # --- trim amounts (SConvTranspose1d.forward / unpad1d) ---
    padding_total = K - s
    if causal:
        pad_r = math.ceil(padding_total * trim_right_ratio)
    else:
        pad_r = padding_total // 2
    pad_l = padding_total - pad_r

    budget, vmem_limit = _vmem_policy(vmem_budget_bytes)
    TN, n_sc, sCoutP = _choose_n_tile(sCout, KpCin, cbytes, budget)

    # --- phase-stacked, tap-flipped weights ---
    # wf[j', ci, r*Cout + co] = W[ci, co, s*(Kp-1-j') + r]   (zero-padded taps)
    w_pad = jnp.pad(weight, ((0, 0), (0, 0), (0, Kp * s - K)))
    w_ph = w_pad.reshape(Cin, Cout, Kp, s)
    wf = jnp.transpose(w_ph[:, :, ::-1, :], (2, 0, 3, 1)).reshape(Kp, Cin, sCout)
    wf = jnp.pad(wf, ((0, 0), (0, 0), (0, sCoutP - sCout))).astype(compute_dtype)

    # Fold all taps into one matmul when the lane concat is 128-aligned.
    fold = (Kp == 1) or (Cin % 128 == 0)
    if fold:
        wf = wf.reshape(KpCin, sCoutP)
        w_spec = pl.BlockSpec((KpCin, TN), lambda b, n, i: (0, n))
    else:
        w_spec = pl.BlockSpec((Kp, Cin, TN), lambda b, n, i: (0, 0, n))

    bias_p = jnp.pad(jnp.tile(bias.astype(jnp.float32), (s,)),
                     (0, sCoutP - sCout)).reshape(1, sCoutP)

    # --- time tiling ---
    H = Kp - 1
    HA = _round_up(H, sub) if H > 0 else 0            # aligned halo rows
    Q = L + Kp - 1                                     # phase-time rows needed
    fixed = 2 * KpCin * TN * cbytes + 2 * TN * 4 + HA * Cin * cbytes
    per_tq = (2 + (1 if Kp > 1 else 0)) * Cin * cbytes + 2 * TN * obytes
    TQ = _choose_time_tile(Q, per_tq, fixed, budget, sub, HA, tq_cap)
    nq = _cdiv(Q, TQ)
    Qpad = nq * TQ

    # --- channels-last, right-padded input in compute dtype (no halo gather) ---
    x_blc = jnp.transpose(x, (0, 2, 1)).astype(compute_dtype)
    x_pad = jnp.pad(x_blc, ((0, 0), (0, Qpad - L), (0, 0)))

    kernel = functools.partial(_polyphase_kernel, Kp=Kp, TQ=TQ, HA=HA, fold=fold)

    scratch_shapes = []
    if Kp > 1:
        scratch_shapes.append(pltpu.VMEM((HA + TQ, Cin), compute_dtype))

    flops = 2 * B * Qpad * KpCin * sCoutP
    bytes_accessed = (B * n_sc * Qpad * Cin * cbytes
                      + KpCin * sCoutP * cbytes
                      + B * Qpad * sCoutP * obytes
                      + sCoutP * 4)

    out = pl.pallas_call(
        kernel,
        out_shape=jax.ShapeDtypeStruct((B, Qpad, sCoutP), out_dtype),
        grid_spec=pltpu.PrefetchScalarGridSpec(
            num_scalar_prefetch=0,
            grid=(B, n_sc, nq),                       # time axis innermost
            in_specs=[
                pl.BlockSpec((1, TQ, Cin), lambda b, n, i: (b, i, 0)),
                w_spec,
                pl.BlockSpec((1, TN), lambda b, n, i: (0, n)),
            ],
            out_specs=pl.BlockSpec((1, TQ, TN), lambda b, n, i: (b, i, n)),
            scratch_shapes=scratch_shapes,
        ),
        compiler_params=pltpu.CompilerParams(
            dimension_semantics=("parallel", "parallel", "arbitrary"),
            vmem_limit_bytes=int(vmem_limit)),
        cost_estimate=pl.CostEstimate(
            flops=int(flops), transcendentals=0,
            bytes_accessed=int(bytes_accessed)),
    )(x_pad, wf, bias_p)

    # Drop lane padding, interleave phases (cheap reshape), trim (unpad1d),
    # and return to (B, Cout, L*s).
    y = out[:, :, :sCout].reshape(B, Qpad * s, Cout)
    y = y[:, pad_l:pad_l + L * s, :]
    return jnp.transpose(y, (0, 2, 1))


def _reference(x, weight, bias, stride, causal=False, trim_right_ratio=1.0):
    """Vectorized pure-JAX reference matching SConvTranspose1d.forward (norm='none')."""
    B, Cin, L = x.shape
    _, Cout, K = weight.shape
    s = int(stride)
    # ConvTranspose1d == input-dilated full correlation with the flipped,
    # (Cin, Cout)-transposed kernel.
    rhs = jnp.transpose(weight[:, :, ::-1], (1, 0, 2))        # (Cout, Cin, K)
    y = lax.conv_general_dilated(
        x.astype(jnp.float32), rhs.astype(jnp.float32),
        window_strides=(1,), padding=[(K - 1, K - 1)],
        lhs_dilation=(s,), rhs_dilation=(1,),
        dimension_numbers=("NCH", "OIH", "NCH"),
        precision=lax.Precision.HIGHEST)
    y = y + bias.astype(jnp.float32)[None, :, None]
    padding_total = K - s
    if causal:
        pad_r = math.ceil(padding_total * trim_right_ratio)
    else:
        pad_r = padding_total // 2
    pad_l = padding_total - pad_r
    Lout_full = (L - 1) * s + K
    return y[:, :, pad_l:Lout_full - pad_r]


if __name__ == "__main__":
    key = jax.random.PRNGKey(0)

    configs = [
        # (B, Cin, Cout, L, K, stride, causal, trim_right_ratio)
        (2, 4, 6, 16, 4, 2, False, 1.0),      # tiny, sCout < 128 (lane-padded path)
        (2, 8, 16, 12, 8, 4, True, 1.0),      # causal trim
        (1, 4, 4, 16, 3, 1, False, 1.0),      # stride 1, Kp = 3 per-tap path
        (2, 16, 8, 64, 4, 4, False, 1.0),     # K == stride (Kp = 1, no halo)
        (1, 128, 32, 520, 8, 4, False, 1.0),  # Cin % 128 == 0 -> folded single-matmul path
        (2, 32, 32, 1200, 8, 4, False, 1.0),  # multiple time tiles (halo carry path)
    ]
    for cfg in configs:
        (B, Cin, Cout, L, K, s, causal, trr) = cfg
        key, kx, kw, kb = jax.random.split(key, 4)
        x = jax.random.normal(kx, (B, Cin, L), jnp.float32)
        weight = jax.random.normal(kw, (Cin, Cout, K), jnp.float32) * 0.1
        bias = jax.random.normal(kb, (Cout,), jnp.float32) * 0.1

        y = sconv_transpose1d(x, weight, bias, stride=s, causal=causal,
                              trim_right_ratio=trr)
        y = jax.block_until_ready(y)

        # Reference on bf16-rounded inputs (the kernel feeds the MXU in bf16
        # with f32 accumulation), so the comparison isolates kernel logic.
        x_r = x.astype(jnp.bfloat16).astype(jnp.float32)
        w_r = weight.astype(jnp.bfloat16).astype(jnp.float32)
        y_ref = _reference(x_r, w_r, bias, s, causal, trr)

        assert y.shape == y_ref.shape, (cfg, y.shape, y_ref.shape)
        err = float(jnp.max(jnp.abs(y.astype(jnp.float32) - y_ref)))
        assert err < 5e-3, (cfg, err)

    print("KERNEL_OK")
</pallas_src>

<mosaic_0001>
module attributes {stable_mosaic.version = 11 : i64} {
  func.func @_polyphase_kernel(%arg0: i32, %arg1: i32, %arg2: i32, %arg3: memref<1x32x4xbf16, #tpu.memory_space<vmem>>, %arg4: memref<2x4x128xbf16, #tpu.memory_space<vmem>>, %arg5: memref<1x128xf32, #tpu.memory_space<vmem>>, %arg6: memref<1x32x128xf32, #tpu.memory_space<vmem>>, %arg7: memref<48x4xbf16, #tpu.memory_space<vmem>>) attributes {dimension_semantics = [#tpu.dimension_semantics<parallel>, #tpu.dimension_semantics<parallel>, #tpu.dimension_semantics<arbitrary>], iteration_bounds = array<i64: 2, 1, 1>, scalar_prefetch = 0 : i64, scratch_operands = 1 : i64, tpu.core_type = #tpu.core_type<tc>, window_params = [{transform_indices = @transform_0, window_bounds = array<i64: 1, 32, 4>}, {transform_indices = @transform_1, window_bounds = array<i64: 2, 4, 128>}, {transform_indices = @transform_2, window_bounds = array<i64: 1, 128>}, {transform_indices = @transform_3, window_bounds = array<i64: 1, 32, 128>}]} {
    %c0_i32 = arith.constant 0 : i32
    %0 = arith.cmpi eq, %arg2, %c0_i32 : i32
    %1 = arith.extui %0 : i1 to i32
    %c0_i32_0 = arith.constant 0 : i32
    %2 = arith.cmpi ne, %1, %c0_i32_0 : i32
    scf.if %2 {
      %cst_20 = arith.constant 0.000000e+00 : bf16
      %24 = vector.broadcast %cst_20 : bf16 to vector<16x4xbf16>
      %c0_21 = arith.constant 0 : index
      %c0_22 = arith.constant 0 : index
      %25 = vector.load %arg7[%c0_21, %c0_22] : memref<48x4xbf16, #tpu.memory_space<vmem>>, vector<16x4xbf16>
      tpu.vector_store %arg7[%c0_21, %c0_22], %24 {strides = array<i32>} : memref<48x4xbf16, #tpu.memory_space<vmem>>, vector<16x4xbf16>,
    } else {
    }
    %c0_i32_1 = arith.constant 0 : i32
    %3 = arith.cmpi sgt, %arg2, %c0_i32_1 : i32
    %4 = arith.extui %3 : i1 to i32
    %c0_i32_2 = arith.constant 0 : i32
    %5 = arith.cmpi ne, %4, %c0_i32_2 : i32
    scf.if %5 {
      %c32 = arith.constant 32 : index
      %c0_20 = arith.constant 0 : index
      %24 = vector.load %arg7[%c32, %c0_20] : memref<48x4xbf16, #tpu.memory_space<vmem>>, vector<16x4xbf16>
      %c0_21 = arith.constant 0 : index
      %c0_22 = arith.constant 0 : index
      %25 = vector.load %arg7[%c0_21, %c0_22] : memref<48x4xbf16, #tpu.memory_space<vmem>>, vector<16x4xbf16>
      tpu.vector_store %arg7[%c0_21, %c0_22], %24 {strides = array<i32>} : memref<48x4xbf16, #tpu.memory_space<vmem>>, vector<16x4xbf16>,
    } else {
    }
    %c0 = arith.constant 0 : index
    %c0_3 = arith.constant 0 : index
    %c0_4 = arith.constant 0 : index
    %6 = vector.load %arg3[%c0, %c0_3, %c0_4] : memref<1x32x4xbf16, #tpu.memory_space<vmem>>, vector<1x32x4xbf16>
    %7 = vector.shape_cast %6 : vector<1x32x4xbf16> to vector<32x4xbf16>
    %c16 = arith.constant 16 : index
    %c0_5 = arith.constant 0 : index
    %8 = vector.load %arg7[%c16, %c0_5] : memref<48x4xbf16, #tpu.memory_space<vmem>>, vector<32x4xbf16>
    tpu.vector_store %arg7[%c16, %c0_5], %7 {strides = array<i32>} : memref<48x4xbf16, #tpu.memory_space<vmem>>, vector<32x4xbf16>,
    %c15 = arith.constant 15 : index
    %c0_6 = arith.constant 0 : index
    %9 = vector.load %arg7[%c15, %c0_6] : memref<48x4xbf16, #tpu.memory_space<vmem>>, vector<32x4xbf16>
    %c0_7 = arith.constant 0 : index
    %c0_8 = arith.constant 0 : index
    %c0_9 = arith.constant 0 : index
    %10 = vector.load %arg4[%c0_7, %c0_8, %c0_9] : memref<2x4x128xbf16, #tpu.memory_space<vmem>>, vector<1x4x128xbf16>
    %11 = vector.shape_cast %10 : vector<1x4x128xbf16> to vector<4x128xbf16>
    %cst = arith.constant dense<0.000000e+00> : vector<32x128xf32>
    %12 = tpu.matmul %9, %11, %cst {dimension_numbers = #tpu.dot_dimension_numbers<[1], [0], [0], [1], [0, 0, 1, 1], [], []>} : vector<32x4xbf16>, vector<4x128xbf16>, vector<32x128xf32> -> vector<32x128xf32>
    %c16_10 = arith.constant 16 : index
    %c0_11 = arith.constant 0 : index
    %13 = vector.load %arg7[%c16_10, %c0_11] : memref<48x4xbf16, #tpu.memory_space<vmem>>, vector<32x4xbf16>
    %c1 = arith.constant 1 : index
    %c0_12 = arith.constant 0 : index
    %c0_13 = arith.constant 0 : index
    %14 = vector.load %arg4[%c1, %c0_12, %c0_13] : memref<2x4x128xbf16, #tpu.memory_space<vmem>>, vector<1x4x128xbf16>
    %15 = vector.shape_cast %14 : vector<1x4x128xbf16> to vector<4x128xbf16>
    %cst_14 = arith.constant dense<0.000000e+00> : vector<32x128xf32>
    %16 = tpu.matmul %13, %15, %cst_14 {dimension_numbers = #tpu.dot_dimension_numbers<[1], [0], [0], [1], [0, 0, 1, 1], [], []>} : vector<32x4xbf16>, vector<4x128xbf16>, vector<32x128xf32> -> vector<32x128xf32>
    %17 = arith.addf %12, %16 : vector<32x128xf32>
    %c0_15 = arith.constant 0 : index
    %c0_16 = arith.constant 0 : index
    %18 = vector.load %arg5[%c0_15, %c0_16] : memref<1x128xf32, #tpu.memory_space<vmem>>, vector<1x128xf32>
    %19 = vector.broadcast %18 : vector<1x128xf32> to vector<32x128xf32>
    %20 = arith.addf %17, %19 : vector<32x128xf32>
    %c0_17 = arith.constant 0 : index
    %c0_18 = arith.constant 0 : index
    %c0_19 = arith.constant 0 : index
    %21 = vector.load %arg6[%c0_17, %c0_18, %c0_19] : memref<1x32x128xf32, #tpu.memory_space<vmem>>, vector<1x32x128xf32>
    %22 = vector.shape_cast %21 : vector<1x32x128xf32> to vector<32x128xf32>
    %23 = vector.shape_cast %20 : vector<32x128xf32> to vector<1x32x128xf32>
    tpu.vector_store %arg6[%c0_17, %c0_18, %c0_19], %23 {strides = array<i32>} : memref<1x32x128xf32, #tpu.memory_space<vmem>>, vector<1x32x128xf32>,
    return
  }
  func.func @transform_0(%arg0: i32, %arg1: i32, %arg2: i32) -> (i32, i32, i32) {
    %c0_i32 = arith.constant 0 : i32
    %c0_i32_0 = arith.constant 0 : i32
    return %arg0, %arg2, %c0_i32 : i32, i32, i32
  }
  func.func @transform_1(%arg0: i32, %arg1: i32, %arg2: i32) -> (i32, i32, i32) {
    %c0_i32 = arith.constant 0 : i32
    %c0_i32_0 = arith.constant 0 : i32
    %c0_i32_1 = arith.constant 0 : i32
    return %c0_i32, %c0_i32_0, %arg1 : i32, i32, i32
  }
  func.func @transform_2(%arg0: i32, %arg1: i32, %arg2: i32) -> (i32, i32) {
    %c0_i32 = arith.constant 0 : i32
    %c0_i32_0 = arith.constant 0 : i32
    return %c0_i32, %arg1 : i32, i32
  }
  func.func @transform_3(%arg0: i32, %arg1: i32, %arg2: i32) -> (i32, i32, i32) {
    %c0_i32 = arith.constant 0 : i32
    return %arg0, %arg2, %arg1 : i32, i32, i32
  }
}

</mosaic_0001>

<llo_original>
// kernel: tpu_custom_call.1
$region0: #{tpu_custom_call.1}
  #allocation0 [shape = 'u32[]', space=smem, size = 0x4, offset = 0x4, fixed_abs, tag = 'smem constant byte address 0x4 - core index']
  #allocation1 [shape = 'u32[72,128]{1,0:T(1,128)}', space=vmem, size = 0x9000, scoped, tag = 'internal scratch']
  #allocation2 [shape = 'bf16[48,4]{1,0:T(8,128)(2,1)}', space=vmem, size = 0x3000, scoped, tag = 'scratch operand']
  %s0 = inlined_call_operand.vmem [shape: bf16[2,32,4], index: 0, kind: input, shape index: {}]
  %s1 = inlined_call_operand.vmem [shape: bf16[2,4,128], index: 1, kind: input, shape index: {}]
  %s2 = inlined_call_operand.vmem [shape: f32[1,128], index: 2, kind: input, shape index: {}]
  %s3 = inlined_call_operand.hbm [shape: f32[2,32,128], index: 3, kind: output, shape index: {}]
  %s4 = sld [smem:[#allocation0]]
  $region53: #{tpu_custom_call.1} parent=0
    _
  %s6 = ssub.s32 1, %s4
  %s7 = scalar_select 0, %s6, %s4
  $region1: #{tpu_custom_call.1} parent=0
    #allocation3 [shape = 'u8[32768]{0}', space=vmem, size = 0x8000, scoped, tag = 'output window, operand 0']
    #allocation4 [shape = 's32[2]{0}', space=sflag, size = 0x8, scoped, tag = 'scoped memory for tpu_custom_call.1']
    %8 = vsyncpa [#allocation4], 0
    %s9 = scalar_lea.sflag [#allocation4], 1
    %10 = vsyncpa %s9, 0
    loop: start=0, step=1, limit=4
    $region2: #{tpu_custom_call.1} parent=1 // loop_pre_header
      _
    $region3: #{tpu_custom_call.1} parent=1 // loop_header
      %s12 = sphi 0, %s16
      %p13 = scmp.ge.s32.totalorder %s12, 4
      %s19 = sphi 0, %s38
      %s20 = sphi 0, %s34
      %s21 = sphi 0, %s30
      %s22 = sphi 0, %s19
      %s23 = sphi 0, %s20
      %s24 = sphi 0, %s21
      %s25 = sphi 0, %s22
      %s26 = sphi 0, %s23
      %s27 = sphi 0, %s24
      %s43 = sphi 0, %s45
      %s46 = sphi 0, %s43
      %s47 = sphi 0, %s46
      %s63 = sphi 0, %s47
      %s69 = sphi 0, %s71
      %s72 = sphi 0, %s69
      %s73 = sphi 0, %s72
      %s89 = sphi 0, %s73
      %s95 = sphi 0, %s97
      %s98 = sphi 0, %s95
      %s99 = sphi 0, %s98
      %s115 = sphi 0, %s99
      %s125 = sphi 0, %s127
      %s128 = sphi 0, %s125
      %s129 = sphi 0, %s128
      %s145 = sphi 0, %s129
    $region4: #{tpu_custom_call.1} parent=1 // loop_header_branch
      %15 = sbr.rel (%p13) target = $region8
    $region5: #{tpu_custom_call.1} parent=1 // loop_body
      %s17 = ssub.s32 %s12, 1
      %s18 = ssub.s32 %s12, 2
      %s28 = sadd.s32 1, %s21
      %p29 = scmp.ge.s32.totalorder %s28, 1
      %s30 = scalar_select %p29, 0, %s28
      %s31 = sadd.s32 1, %s20
      %s32 = scalar_select %p29, %s31, %s20
      %p33 = scmp.ge.s32.totalorder %s32, 1
      %s34 = scalar_select %p33, 0, %s32
      %s35 = sadd.s32 1, %s19
      %s36 = scalar_select %p33, %s35, %s19
      %p37 = scmp.ge.s32.totalorder %s36, 2
      %s38 = scalar_select %p37, 0, %s36
      %s39 = ssub.s32 %s19, %s38
      %s40 = ssub.s32 %s21, %s30
      %s41 = sor.u32 %s39, %s40
      %p42 = scmp.eq.s32.totalorder %s41, 0
      %s44 = sadd.s32 %s43, 1
      %s45 = scalar_select %p42, %s43, %s44
      %p48 = pneg %p42
      %p49 = scmp.eq.s32.totalorder %s12, 1
      %p50 = por %p48, %p49
      %p51 = scmp.ne.s32.totalorder %s43, %s46
      %p52 = scmp.eq.s32.totalorder %s12, 0
      %p53 = por %p51, %p52
      %p54 = scmp.ne.s32.totalorder %s43, %s46
      %p55 = scmp.eq.s32.totalorder %s17, 1
      %p56 = por %p54, %p55
      %p57 = scmp.ne.s32.totalorder %s46, %s47
      %p58 = scmp.eq.s32.totalorder %s17, 0
      %p59 = por %p57, %p58
      %p60 = scmp.ne.s32.totalorder %s46, %s47
      %p61 = scmp.eq.s32.totalorder %s18, 1
      %p62 = por %p60, %p61
      %p64 = scmp.ne.s32.totalorder %s47, %s63
      %p65 = scmp.eq.s32.totalorder %s18, 0
      %p66 = por %p64, %p65
      %s67 = ssub.s32 %s20, %s34
      %p68 = scmp.eq.s32.totalorder %s67, 0
      %s70 = sadd.s32 %s69, 1
      %s71 = scalar_select %p68, %s69, %s70
      %p74 = pneg %p68
      %p75 = scmp.eq.s32.totalorder %s12, 1
      %p76 = por %p74, %p75
      %p77 = scmp.ne.s32.totalorder %s69, %s72
      %p78 = scmp.eq.s32.totalorder %s12, 0
      %p79 = por %p77, %p78
      %p80 = scmp.ne.s32.totalorder %s69, %s72
      %p81 = scmp.eq.s32.totalorder %s17, 1
      %p82 = por %p80, %p81
      %p83 = scmp.ne.s32.totalorder %s72, %s73
      %p84 = scmp.eq.s32.totalorder %s17, 0
      %p85 = por %p83, %p84
      %p86 = scmp.ne.s32.totalorder %s72, %s73
      %p87 = scmp.eq.s32.totalorder %s18, 1
      %p88 = por %p86, %p87
      %p90 = scmp.ne.s32.totalorder %s73, %s89
      %p91 = scmp.eq.s32.totalorder %s18, 0
      %p92 = por %p90, %p91
      %s93 = ssub.s32 %s20, %s34
      %p94 = scmp.eq.s32.totalorder %s93, 0
      %s96 = sadd.s32 %s95, 1
      %s97 = scalar_select %p94, %s95, %s96
      %p100 = pneg %p94
      %p101 = scmp.eq.s32.totalorder %s12, 1
      %p102 = por %p100, %p101
      %p103 = scmp.ne.s32.totalorder %s95, %s98
      %p104 = scmp.eq.s32.totalorder %s12, 0
      %p105 = por %p103, %p104
      %p106 = scmp.ne.s32.totalorder %s95, %s98
      %p107 = scmp.eq.s32.totalorder %s17, 1
      %p108 = por %p106, %p107
      %p109 = scmp.ne.s32.totalorder %s98, %s99
      %p110 = scmp.eq.s32.totalorder %s17, 0
      %p111 = por %p109, %p110
      %p112 = scmp.ne.s32.totalorder %s98, %s99
      %p113 = scmp.eq.s32.totalorder %s18, 1
      %p114 = por %p112, %p113
      %p116 = scmp.ne.s32.totalorder %s99, %s115
      %p117 = scmp.eq.s32.totalorder %s18, 0
      %p118 = por %p116, %p117
      %s119 = ssub.s32 %s19, %s38
      %s120 = ssub.s32 %s21, %s30
      %s121 = sor.u32 %s119, %s120
      %s122 = ssub.s32 %s20, %s34
      %s123 = sor.u32 %s121, %s122
      %p124 = scmp.eq.s32.totalorder %s123, 0
      %s126 = sadd.s32 %s125, 1
      %s127 = scalar_select %p124, %s125, %s126
      %p130 = pneg %p124
      %p131 = scmp.eq.s32.totalorder %s12, 1
      %p132 = por %p130, %p131
      %p133 = scmp.ne.s32.totalorder %s125, %s128
      %p134 = scmp.eq.s32.totalorder %s12, 0
      %p135 = por %p133, %p134
      %p136 = scmp.ne.s32.totalorder %s125, %s128
      %p137 = scmp.eq.s32.totalorder %s17, 1
      %p138 = por %p136, %p137
      %p139 = scmp.ne.s32.totalorder %s128, %s129
      %p140 = scmp.eq.s32.totalorder %s17, 0
      %p141 = por %p139, %p140
      %p142 = scmp.ne.s32.totalorder %s128, %s129
      %p143 = scmp.eq.s32.totalorder %s18, 1
      %p144 = por %p142, %p143
      %p146 = scmp.ne.s32.totalorder %s129, %s145
      %p147 = scmp.eq.s32.totalorder %s18, 0
      %p148 = por %p146, %p147
      %p149 = scmp.le.s32.totalorder 1, %s12
      %p150 = scmp.lt.s32.totalorder %s12, 3
      %p151 = pnand %p149, %p150
      %p152 = pneg %p151
      // Predicated region
      $region9: #{tpu_custom_call.1} parent=5 // pred_check
        _
      $region10: #{tpu_custom_call.1} parent=5 // pred_check_branch
        %154 = sbr.rel (%p151) target = $region12
      $region11: #{tpu_custom_call.1} parent=5 // pred_region
        %s155 = ssub.s32 %s12, 1
        // Predicated region
        $region13: #{tpu_custom_call.1} parent=11 // pred_check
          %p156 = pneg %p85
        $region14: #{tpu_custom_call.1} parent=11 // pred_check_branch
          %158 = sbr.rel (%p156) target = $region16
        $region15: #{tpu_custom_call.1} parent=11 // pred_region
          %p159 = scmp.lt.s32.totalorder %s23, 0
          %s160 = scalar_select %p159, %s23, 0
          %s161 = smul.addr %s160, 2
          %s162 = scalar_lea.vmem %s1, %s161
        $region16: #{tpu_custom_call.1} parent=11 // pred_fallthru
          _
        // Predicated region
        $region17: #{tpu_custom_call.1} parent=11 // pred_check
          %p163 = pneg %p111
        $region18: #{tpu_custom_call.1} parent=11 // pred_check_branch
          %165 = sbr.rel (%p163) target = $region20
        $region19: #{tpu_custom_call.1} parent=11 // pred_region
          %p166 = scmp.lt.s32.totalorder %s23, 0
          %s167 = scalar_select %p166, %s23, 0
          %s168 = scalar_lea.vmem %s2, %s167
        $region20: #{tpu_custom_call.1} parent=11 // pred_fallthru
          _
      $region12: #{tpu_custom_call.1} parent=5 // pred_fallthru
        _
      %p169 = scmp.lt.s32.totalorder %s12, 2
      // Predicated region
      $region21: #{tpu_custom_call.1} parent=5 // pred_check
        %p170 = pneg %p169
      $region22: #{tpu_custom_call.1} parent=5 // pred_check_branch
        %172 = sbr.rel (%p170) target = $region24
      $region23: #{tpu_custom_call.1} parent=5 // pred_region
        // Predicated region
        $region25: #{tpu_custom_call.1} parent=23 // pred_check
          %p173 = pneg %p53
        $region26: #{tpu_custom_call.1} parent=23 // pred_check_branch
          %175 = sbr.rel (%p173) target = $region28
        $region27: #{tpu_custom_call.1} parent=23 // pred_region
          %s176 = smul.u32 4, %s21
          %p177 = scmp.lt.s32.totalorder %s19, 1
          %s178 = scalar_select %p177, %s19, 1
          %p179 = scmp.lt.s32.totalorder %s176, 3
          %s180 = scalar_select %p179, %s176, 3
          %s181 = smul.addr %s178, 4
          %s182 = sadd.s32 %s180, %s181
          %s183 = smul.addr %s182, 4
          %s184 = scalar_lea.vmem %s0, %s183
          %s185 = smul.u32 4, %s21
        $region28: #{tpu_custom_call.1} parent=23 // pred_fallthru
          _
      $region24: #{tpu_custom_call.1} parent=5 // pred_fallthru
        _
      %p186 = scmp.le.s32.totalorder 1, %s12
      %p187 = scmp.lt.s32.totalorder %s12, 3
      %p188 = pnand %p186, %p187
      %p189 = pneg %p188
      // Predicated region
      $region29: #{tpu_custom_call.1} parent=5 // pred_check
        _
      $region30: #{tpu_custom_call.1} parent=5 // pred_check_branch
        %191 = sbr.rel (%p188) target = $region32
      $region31: #{tpu_custom_call.1} parent=5 // pred_region
        %s192 = ssub.s32 %s12, 1
        %s193 = smul.u32 4, %s24
        %p194 = scmp.lt.s32.totalorder %s22, 1
        %s195 = scalar_select %p194, %s22, 1
        %p196 = scmp.lt.s32.totalorder %s193, 3
        %s197 = scalar_select %p196, %s193, 3
        %s198 = smul.addr %s195, 4
        %s199 = sadd.s32 %s197, %s198
        %s200 = smul.addr %s199, 4
        %s201 = scalar_lea.vmem %s0, %s200
        %p202 = pneg %p59
        %p203 = pneg %p56
        %p204 = scmp.lt.s32.totalorder %s23, 0
        %s205 = scalar_select %p204, %s23, 0
        %s206 = smul.addr %s205, 2
        %s207 = scalar_lea.vmem %s1, %s206
        %p208 = pneg %p85
        %p209 = pneg %p82
        %p210 = scmp.lt.s32.totalorder %s23, 0
        %s211 = scalar_select %p210, %s23, 0
        %s212 = scalar_lea.vmem %s2, %s211
        %p213 = pneg %p111
        %p214 = pneg %p108
        %p215 = pneg %p141
        %p216 = pneg %p138
        %s217 = sand.u32 %s128, 1
        %s218 = scalar_lea.sflag [#allocation4], %s217
        %s219 = sand.u32 %s128, 1
        %s220 = smul.addr %s219, 32
        %s221 = scalar_lea.vmem [#allocation3], %s220
        %s222 = smul.u32 4, %s24
        %p223 = scmp.lt.s32.totalorder %s22, 1
        %s224 = scalar_select %p223, %s22, 1
        %p225 = scmp.lt.s32.totalorder %s222, 3
        %s226 = scalar_select %p225, %s222, 3
        %s227 = smul.addr %s224, 4
        %s228 = sadd.s32 %s226, %s227
        %s229 = smul.addr %s228, 4
        %s230 = scalar_lea.vmem %s0, %s229
        %s231 = smul.u32 4, %s24
        %p232 = scmp.lt.s32.totalorder %s23, 0
        %s233 = scalar_select %p232, %s23, 0
        %s234 = smul.addr %s233, 2
        %s235 = scalar_lea.vmem %s1, %s234
        %p236 = scmp.lt.s32.totalorder %s23, 0
        %s237 = scalar_select %p236, %s23, 0
        %s238 = scalar_lea.vmem %s2, %s237
        %s239 = smul.u32 4, %s24
        %p241 = scmp.eq.s32.totalorder %s24, 0
        // Predicated region
        $region33: #{tpu_custom_call.1} parent=31 // pred_check
          %p242 = pneg %p241
        $region34: #{tpu_custom_call.1} parent=31 // pred_check_branch
          %244 = sbr.rel (%p242) target = $region36
        $region35: #{tpu_custom_call.1} parent=31 // pred_region
          %vm245 = vcmask 27648
          %246 = vst.msk [vmem:[#allocation2] sm:$0xf] %vm245, 0
          %247 = vst.msk [vmem:[#allocation2 + $0x4] sm:$0xf] %vm245, 0
        $region36: #{tpu_custom_call.1} parent=31 // pred_fallthru
          _
        %p248 = scmp.gt.s32.totalorder %s24, 0
        // Predicated region
        $region37: #{tpu_custom_call.1} parent=31 // pred_check
          %p249 = pneg %p248
        $region38: #{tpu_custom_call.1} parent=31 // pred_check_branch
          %251 = sbr.rel (%p249) target = $region40
        $region39: #{tpu_custom_call.1} parent=31 // pred_region
          %v252 = vld [vmem:[#allocation2 + $0x10] sm:$0xf]
          %v253 = vld [vmem:[#allocation2 + $0x14] sm:$0xf]
          %vm254 = vcmask 27648
          %255 = vst.msk [vmem:[#allocation2] sm:$0xf] %vm254, %v252
          %256 = vst.msk [vmem:[#allocation2 + $0x4] sm:$0xf] %vm254, %v253
        $region40: #{tpu_custom_call.1} parent=31 // pred_fallthru
          _
        %v257 = vld [vmem:[%s230] sm:$0xf]
        %v258 = vld [vmem:[%s230 + $0x4] sm:$0xf]
        %v259 = vld [vmem:[%s230 + $0x8] sm:$0xf]
        %v260 = vld [vmem:[%s230 + $0xc] sm:$0xf]
        %vm261 = vcmask 27648
        %262 = vst.msk [vmem:[#allocation2 + $0x8] sm:$0xf] %vm261, %v257
        %263 = vst.msk [vmem:[#allocation2 + $0xc] sm:$0xf] %vm261, %v258
        %264 = vst.msk [vmem:[#allocation2 + $0x10] sm:$0xf] %vm261, %v259
        %265 = vst.msk [vmem:[#allocation2 + $0x14] sm:$0xf] %vm261, %v260
        %v266 = vld [vmem:[#allocation2 + $0x4] sm:$0x8]
        %v267 = vld [vmem:[#allocation2 + $0x8] sm:$0xf]
        %v268 = vld [vmem:[#allocation2 + $0xc] sm:$0xf]
        %v269 = vld [vmem:[#allocation2 + $0x10] sm:$0xf]
        %v270 = vld [vmem:[#allocation2 + $0x14] sm:$0xf]
        %v271 = vld [vmem:[%s235] sm:$0x3]
        %s272 = scalar_lea.vmem %s235, 2
        %v273 = vld [vmem:[%s272] sm:$0x3]
        %v278 = vunpack.c.l.b16 %v267
        %v279 = vunpack.c.l.b16 %v268
        %v280 = vunpack.c.l.b16 %v269
        %v281 = vunpack.c.l.b16 %v270
        %v282 = vpack.c.b16 %v279, %v278
        %v283 = vpack.c.b16 %v281, %v280
        %vm284 = vcmask 31744
        %v286 = vsel %vm284, %v282, 0
        %v289 = vsel %vm284, %v283, 0
        %vm291 = vcmask 1041408
        %v293 = vsel %vm291, %v273, 0
        %295 = vmatpush.bf16.msra.mxu0 0
        %296 = vmatpush.bf16.msra.mxu0 0
        %297 = vmatpush.bf16.msra.mxu0 0
        %298 = vmatpush.bf16.msra.mxu0 0
        %299 = vmatpush.bf16.msra.mxu0 0
        %300 = vmatpush.bf16.msra.mxu0 0
        %301 = vmatpush.bf16.msra.mxu0 0
        %302 = vmatpush.bf16.msra.mxu0 %v293
        %303 = vmatmul.bf16.gmra.mxu0 %v286
        %v304 = vpop.f32.mrf.mxu0
        %v305 = vadd.f32 0.0, %v304
        %v306 = vpop.f32.mrf.mxu0
        %v307 = vadd.f32 0.0, %v306
        %308 = vmatmul.bf16.gmra.mxu0 %v289
        %v309 = vpop.f32.mrf.mxu0
        %v310 = vadd.f32 0.0, %v309
        %v311 = vpop.f32.mrf.mxu0
        %v312 = vadd.f32 0.0, %v311
        %313 = vdwg.mxu0
        %v315 = vunpack.c.l.b16 %v266
        %v316 = vpack.c.b16 %v278, %v315
        %v317 = vpack.c.b16 %v280, %v279
        %v318 = vpack.c.b16 %v281, %v281
        %vm319 = vsmask.f32 4352
        %v321 = vshrl.u32 %v316, 16
        %v323 = vrot.slane %v321, 3
        %v324 = vshll.u32 %v316, 16
        %v326 = vrot.slane %v324, 4
        %v327 = vor.u32 %v323, %v326
        %v329 = vshrl.u32 %v317, 16
        %v331 = vrot.slane %v329, 3
        %v332 = vshll.u32 %v317, 16
        %v334 = vrot.slane %v332, 4
        %v335 = vor.u32 %v331, %v334
        %v336 = vsel %vm319, %v327, %v335
        %v338 = vshrl.u32 %v318, 16
        %v340 = vrot.slane %v338, 3
        %v341 = vshll.u32 %v318, 16
        %v343 = vrot.slane %v341, 4
        %v344 = vor.u32 %v340, %v343
        %v345 = vsel %vm319, %v335, %v344
        %v347 = vsel %vm284, %v336, 0
        %v350 = vsel %vm284, %v345, 0
        %v353 = vsel %vm291, %v271, 0
        %355 = vmatpush.bf16.msra.mxu0 0
        %356 = vmatpush.bf16.msra.mxu0 0
        %357 = vmatpush.bf16.msra.mxu0 0
        %358 = vmatpush.bf16.msra.mxu0 0
        %359 = vmatpush.bf16.msra.mxu0 0
        %360 = vmatpush.bf16.msra.mxu0 0
        %361 = vmatpush.bf16.msra.mxu0 0
        %362 = vmatpush.bf16.msra.mxu0 %v353
        %363 = vmatmul.bf16.gmra.mxu0 %v347
        %v364 = vpop.f32.mrf.mxu0
        %v365 = vadd.f32 %v305, %v364
        %v366 = vpop.f32.mrf.mxu0
        %v367 = vadd.f32 %v307, %v366
        %368 = vmatmul.bf16.gmra.mxu0 %v350
        %v369 = vpop.f32.mrf.mxu0
        %v370 = vadd.f32 %v310, %v369
        %v371 = vpop.f32.mrf.mxu0
        %v372 = vadd.f32 %v312, %v371
        %373 = vdwg.mxu0
        %v374 = vld [vmem:[%s238] sm:$0x1]
        %v376 = vperm.slane %v374, 0
        %v378 = vadd.f32 %v365, %v376
        %v379 = vadd.f32 %v367, %v376
        %v380 = vadd.f32 %v370, %v376
        %v381 = vadd.f32 %v372, %v376
        %382 = vst [vmem:[%s221] sm:$0xff] %v378
        %383 = vst [vmem:[%s221 + $0x8] sm:$0xff] %v379
        %384 = vst [vmem:[%s221 + $0x10] sm:$0xff] %v380
        %385 = vst [vmem:[%s221 + $0x18] sm:$0xff] %v381
        %s386 = sand.u32 %s128, 1
        %s387 = scalar_lea.sflag [#allocation4], %s386
        %s388 = sand.u32 %s128, 1
        %s389 = smul.addr %s388, 32
        %s390 = scalar_lea.vmem [#allocation3], %s389
        // Predicated region
        $region41: #{tpu_custom_call.1} parent=31 // pred_check
          %p391 = pneg %p138
        $region42: #{tpu_custom_call.1} parent=31 // pred_check_branch
          %393 = sbr.rel (%p391) target = $region44
        $region43: #{tpu_custom_call.1} parent=31 // pred_region
          %s394 = smul.u32 4, %s24
          %396 = vsyncadd %s387, 0
          %s397 = sadd.s32 %s23, %s394
          %s398 = smul.addr %s22, 4
          %s399 = sadd.s32 %s397, %s398
          %s400 = smul.addr %s399, 8
          %s401 = scalar_lea.hbm %s3, %s400
          %s402 = sshll.u32 %s390, 4
          %s403 = int_to_ptr.vmem [resolvable:$true] %s402
          %s404 = sshll.u32 %s401, 4
          %s405 = int_to_ptr.hbm [resolvable:$true] %s404
          %410 = dma.vmem_to_hbm [thread:$0]  %s403, 512, %s405, %s387, 128, 128, 8
        $region44: #{tpu_custom_call.1} parent=31 // pred_fallthru
          _
      $region32: #{tpu_custom_call.1} parent=5 // pred_fallthru
        _
      %p411 = scmp.le.s32.totalorder 2, %s12
      // Predicated region
      $region45: #{tpu_custom_call.1} parent=5 // pred_check
        %p412 = pneg %p411
      $region46: #{tpu_custom_call.1} parent=5 // pred_check_branch
        %414 = sbr.rel (%p412) target = $region48
      $region47: #{tpu_custom_call.1} parent=5 // pred_region
        %s415 = ssub.s32 %s12, 2
        // Predicated region
        $region49: #{tpu_custom_call.1} parent=47 // pred_check
          %p416 = pneg %p144
        $region50: #{tpu_custom_call.1} parent=47 // pred_check_branch
          %418 = sbr.rel (%p416) target = $region52
        $region51: #{tpu_custom_call.1} parent=47 // pred_region
          %s419 = sand.u32 %s129, 1
          %s420 = scalar_lea.sflag [#allocation4], %s419
          %s421 = sand.u32 %s129, 1
          %s422 = smul.addr %s421, 32
          %s423 = scalar_lea.vmem [#allocation3], %s422
          %425 = dma.done %s420, 512
        $region52: #{tpu_custom_call.1} parent=47 // pred_fallthru
          _
      $region48: #{tpu_custom_call.1} parent=5 // pred_fallthru
        _
    $region6: #{tpu_custom_call.1} parent=1 // loop_footer
      %s16 = sadd.s32 1, %s12
    $region7: #{tpu_custom_call.1} parent=1 // loop_footer_branch
      %11 = sbr.rel target = $region3
    $region8: #{tpu_custom_call.1} parent=1 // loop_exit
      _
    %426 = vsyncpa [#allocation4], 1
    %s427 = scalar_lea.sflag [#allocation4], 1
    %428 = vsyncpa %s427, 1

</llo_original>
